<compile_context>
chip_gen: v5e
topology: v5e:2x2
jax: 0.10.0
libtpu: 0.0.40
codegen_flags: <defaults>
</compile_context>

<pallas_src>
import functools

import jax
import jax.numpy as jnp
import numpy as np
from jax import lax
from jax.experimental import pallas as pl
from jax.experimental.pallas import tpu as pltpu

_SQRT_2_OVER_PI = 0.7978845608028654
_GN_EPS = 1e-5


# --------------------------------------------------------------------------
# In-kernel helpers
# --------------------------------------------------------------------------
def _gelu_tanh(x):
    # TODO(synk): PyTorch nn.GELU() defaults to the exact erf form; the tanh
    # approximation is used here (max |delta| ~1e-3) since erf lowering on
    # Mosaic is not relied upon.
    return 0.5 * x * (1.0 + jnp.tanh(_SQRT_2_OVER_PI * (x + 0.044715 * x * x * x)))


def _mean_all(x):
    """Full mean of a 2-D tile, returned as a (1, 1) array (avoids 0-d reduces)."""
    total = jnp.sum(jnp.sum(x, axis=1, keepdims=True), axis=0, keepdims=True)
    return total / float(x.shape[0] * x.shape[1])


def _group_norm_gelu(x, gamma, beta, groups):
    """x: (C, S) f32, gamma/beta: (C, 1). GroupNorm (biased var) -> affine -> GELU."""
    C, _ = x.shape
    cpg = C // groups
    if groups == 1:
        mu = _mean_all(x)
        inv = lax.rsqrt(_mean_all(jnp.square(x - mu)) + _GN_EPS)
        y = (x - mu) * inv
    else:
        c_idx = lax.broadcasted_iota(jnp.int32, (C, 1), 0)
        mean_v = jnp.zeros((C, 1), jnp.float32)
        inv_v = jnp.zeros((C, 1), jnp.float32)
        for g in range(groups):
            xs = x[g * cpg:(g + 1) * cpg, :]
            mu = _mean_all(xs)
            inv = lax.rsqrt(_mean_all(jnp.square(xs - mu)) + _GN_EPS)
            sel = (c_idx >= g * cpg) & (c_idx < (g + 1) * cpg)
            mean_v = jnp.where(sel, mu, mean_v)
            inv_v = jnp.where(sel, inv, inv_v)
        y = (x - mean_v) * inv_v
    return _gelu_tanh(y * gamma + beta)


def _spatial_index_maps(S, D, H, W):
    s = lax.broadcasted_iota(jnp.int32, (1, S), 1)
    return s // (H * W), (s // W) % H, s % W


def _tap_mask(kd, kh, kw, d_idx, h_idx, w_idx, D, H, W):
    """Boundary mask for tap (kd,kh,kw) on the flattened spatial axis (or None)."""
    conds = []
    if kd < 0:
        conds.append(d_idx >= -kd)
    elif kd > 0:
        conds.append(d_idx < D - kd)
    if kh < 0:
        conds.append(h_idx >= -kh)
    elif kh > 0:
        conds.append(h_idx < H - kh)
    if kw < 0:
        conds.append(w_idx >= -kw)
    elif kw > 0:
        conds.append(w_idx < W - kw)
    if not conds:
        return None
    m = conds[0]
    for c in conds[1:]:
        m = m & c
    return m


def _flat_shift(x, off):
    """y[..., s] = x[..., s + off], zero-filled at the flat ends (static shift)."""
    if off == 0:
        return x
    pad = jnp.zeros(x.shape[:-1] + (abs(off),), x.dtype)
    if off > 0:
        return jnp.concatenate([x[..., off:], pad], axis=-1)
    return jnp.concatenate([pad, x[..., :off]], axis=-1)


# --------------------------------------------------------------------------
# Kernel 1: GroupNorm -> GELU -> 1x1x1 Conv3d   (used for Conv1x1 and ConvBlock.conv)
# --------------------------------------------------------------------------
def _gn_gelu_conv1x1_kernel(x_ref, gamma_ref, beta_ref, w_ref, b_ref, o_ref, *, groups):
    h = _group_norm_gelu(x_ref[0], gamma_ref[...], beta_ref[...], groups)   # (Cin, S)
    y = jnp.dot(w_ref[...], h, preferred_element_type=jnp.float32) + b_ref[...]
    o_ref[0] = y.astype(o_ref.dtype)


# --------------------------------------------------------------------------
# Kernel 2: ConvBlock.{expand1, expand2} + concat + SpatialAttention + residual add
# --------------------------------------------------------------------------
def _expand_sa_residual_kernel(x1_ref, g1_ref, b1_ref, w1_ref, bb1_ref,
                               g2_ref, b2_ref, w2_ref, bb2_ref,
                               res_ref, wsa_ref, o_ref, *, groups, dhw):
    D, H, W = dhw
    S = D * H * W
    cout = w1_ref.shape[0]

    x1 = x1_ref[0]                                            # (chid, S)

    # expand1: GN -> GELU -> 1x1 conv (MXU matmul)
    h1 = _group_norm_gelu(x1, g1_ref[...], b1_ref[...], groups)
    e1 = jnp.dot(w1_ref[...], h1, preferred_element_type=jnp.float32) + bb1_ref[...]

    # expand2: GN -> GELU -> 3x3x3 conv as 27 shifted-slab matmuls (flat-axis shifts)
    h2 = _group_norm_gelu(x1, g2_ref[...], b2_ref[...], groups)
    d_idx, h_idx, w_idx = _spatial_index_maps(S, D, H, W)
    acc2 = jnp.zeros((cout, S), jnp.float32)
    for kd in (-1, 0, 1):
        for kh in (-1, 0, 1):
            for kw in (-1, 0, 1):
                off = (kd * H + kh) * W + kw
                tap = ((kd + 1) * 3 + (kh + 1)) * 3 + (kw + 1)
                v = _flat_shift(h2, off)
                m = _tap_mask(kd, kh, kw, d_idx, h_idx, w_idx, D, H, W)
                if m is not None:
                    v = jnp.where(m, v, 0.0)
                acc2 = acc2 + jnp.dot(w2_ref[tap], v,
                                      preferred_element_type=jnp.float32)
    e2 = acc2 + bb2_ref[...]

    # Spatial attention over the (virtual) channel concat of e1 and e2.
    # 1/(2*cout) is pre-folded into the first 27 taps of wsa_ref -> use a sum.
    csum = jnp.sum(e1, axis=0, keepdims=True) + jnp.sum(e2, axis=0, keepdims=True)
    cmax = jnp.maximum(jnp.max(e1, axis=0, keepdims=True),
                       jnp.max(e2, axis=0, keepdims=True))
    acc = jnp.zeros((1, S), jnp.float32)
    for c, feat in enumerate((csum, cmax)):
        for kd in (-1, 0, 1):
            for kh in (-1, 0, 1):
                for kw in (-1, 0, 1):
                    off = (kd * H + kh) * W + kw
                    tap = ((kd + 1) * 3 + (kh + 1)) * 3 + (kw + 1)
                    v = _flat_shift(feat, off)
                    m = _tap_mask(kd, kh, kw, d_idx, h_idx, w_idx, D, H, W)
                    if m is not None:
                        v = jnp.where(m, v, 0.0)
                    acc = acc + wsa_ref[c * 27 + tap] * v
    sa = jax.nn.sigmoid(acc)                                   # (1, S)

    # out = sa * merge + residual, stored lane-dense per channel half (unmasked vst).
    o_ref[0, pl.ds(0, cout), :] = (
        sa * e1 + res_ref[0, pl.ds(0, cout), :]).astype(o_ref.dtype)
    o_ref[0, pl.ds(cout, cout), :] = (
        sa * e2 + res_ref[0, pl.ds(cout, cout), :]).astype(o_ref.dtype)


# --------------------------------------------------------------------------
# pallas_call wrappers
# --------------------------------------------------------------------------
def _compiler_params():
    return pltpu.CompilerParams(
        dimension_semantics=("parallel",),        # batch axis -> both v7x TensorCores
        vmem_limit_bytes=32 * 1024 * 1024,        # explicit, safe on v5e/v6e/v7x
    )


def gn_gelu_conv1x1(x, gamma, beta, w, b, groups):
    """x: (N, Cin, S) -> (N, Cout, S).  GroupNorm -> GELU -> Conv3d(k=1)."""
    N, cin, S = x.shape
    cout = w.shape[0]
    kernel = functools.partial(_gn_gelu_conv1x1_kernel, groups=groups)
    return pl.pallas_call(
        kernel,
        out_shape=jax.ShapeDtypeStruct((N, cout, S), jnp.float32),
        grid_spec=pltpu.PrefetchScalarGridSpec(
            num_scalar_prefetch=0,
            grid=(N,),
            in_specs=[
                pl.BlockSpec((1, cin, S), lambda n: (n, 0, 0)),
                pl.BlockSpec((cin, 1), lambda n: (0, 0)),
                pl.BlockSpec((cin, 1), lambda n: (0, 0)),
                pl.BlockSpec((cout, cin), lambda n: (0, 0)),
                pl.BlockSpec((cout, 1), lambda n: (0, 0)),
            ],
            out_specs=pl.BlockSpec((1, cout, S), lambda n: (n, 0, 0)),
        ),
        compiler_params=_compiler_params(),
    )(x, gamma.reshape(cin, 1), beta.reshape(cin, 1), w, b.reshape(cout, 1))


def convblock_tail_sa_residual(x1, res, p, groups, dhw):
    """Fused expand1 + expand2 + concat + SpatialAttention*merge + residual add."""
    N, chid, S = x1.shape
    cout = p["w_e1"].shape[0]
    cm = 2 * cout
    # Reorder 3x3x3 weights to (27 taps, cout, chid), tap index = kd*9 + kh*3 + kw.
    w27 = jnp.transpose(p["w_e2"], (2, 3, 4, 0, 1)).reshape(27, cout, chid)
    # Fold 1/(2*cout) of the channel mean into the avg-tap SA weights; 54 SMEM scalars.
    w_sa_flat = jnp.concatenate([(p["w_sa"][0, 0] / cm).reshape(-1),
                                 p["w_sa"][0, 1].reshape(-1)]).astype(jnp.float32)
    kernel = functools.partial(_expand_sa_residual_kernel, groups=groups, dhw=dhw)
    const2 = lambda n: (0, 0)
    const3 = lambda n: (0, 0, 0)
    return pl.pallas_call(
        kernel,
        out_shape=jax.ShapeDtypeStruct((N, cm, S), jnp.float32),
        grid_spec=pltpu.PrefetchScalarGridSpec(
            num_scalar_prefetch=0,
            grid=(N,),
            in_specs=[
                pl.BlockSpec((1, chid, S), lambda n: (n, 0, 0)),   # x1
                pl.BlockSpec((chid, 1), const2),                   # expand1 GN gamma
                pl.BlockSpec((chid, 1), const2),                   # expand1 GN beta
                pl.BlockSpec((cout, chid), const2),                # expand1 conv weight
                pl.BlockSpec((cout, 1), const2),                   # expand1 conv bias
                pl.BlockSpec((chid, 1), const2),                   # expand2 GN gamma
                pl.BlockSpec((chid, 1), const2),                   # expand2 GN beta
                pl.BlockSpec((27, cout, chid), const3),            # expand2 conv weight
                pl.BlockSpec((cout, 1), const2),                   # expand2 conv bias
                pl.BlockSpec((1, cm, S), lambda n: (n, 0, 0)),     # residual (Conv1x1 out)
                pl.BlockSpec(memory_space=pltpu.MemorySpace.SMEM), # SA weights (54,)
            ],
            out_specs=pl.BlockSpec((1, cm, S), lambda n: (n, 0, 0)),
        ),
        compiler_params=_compiler_params(),
    )(x1,
      p["ge1_gamma"].reshape(chid, 1), p["ge1_beta"].reshape(chid, 1),
      p["w_e1"], p["b_e1"].reshape(cout, 1),
      p["ge2_gamma"].reshape(chid, 1), p["ge2_beta"].reshape(chid, 1),
      w27, p["b_e2"].reshape(cout, 1),
      res, w_sa_flat)


def basic_block_forward(x, p, *, dimgroup):
    """Pallas forward of BasicBlock: out = SA(ConvBlock(x)) * ConvBlock(x) + Conv1x1(x)."""
    N, cin, D, H, W = x.shape
    S = D * H * W
    assert S % 128 == 0, "spatial volume is flattened onto the lane axis (keep it /128)"
    xf = x.reshape(N, cin, S)
    chid = p["w_cv"].shape[0]
    g_in = cin // dimgroup
    g_hid = chid // dimgroup

    # Residual branch: Conv1x1 = GN -> GELU -> Conv3d(cin, 2*cout, 1)
    c11 = gn_gelu_conv1x1(xf, p["g1_gamma"], p["g1_beta"], p["w_c11"], p["b_c11"], g_in)
    # ConvBlock.conv: GN -> GELU -> Conv3d(cin, chid, 1)
    x1 = gn_gelu_conv1x1(xf, p["gc_gamma"], p["gc_beta"], p["w_cv"], p["b_cv"], g_in)
    # Fused ConvBlock.{expand1,expand2} + concat + SpatialAttention + residual.
    out = convblock_tail_sa_residual(x1, c11, p, g_hid, (D, H, W))
    return out.reshape(N, out.shape[1], D, H, W)


# --------------------------------------------------------------------------
# Pure-JAX reference (matches the PyTorch module, tanh-GELU variant)
# --------------------------------------------------------------------------
def basic_block_ref(x, p, *, dimgroup):
    HI = lax.Precision.HIGHEST

    def gn(v, gamma, beta, groups, eps=_GN_EPS):
        N, C = v.shape[0], v.shape[1]
        vg = v.reshape(N, groups, -1)
        mu = jnp.mean(vg, axis=2, keepdims=True)
        var = jnp.mean(jnp.square(vg - mu), axis=2, keepdims=True)
        vn = ((vg - mu) * lax.rsqrt(var + eps)).reshape(v.shape)
        shp = (1, C, 1, 1, 1)
        return vn * gamma.reshape(shp) + beta.reshape(shp)

    def gelu(v):
        return 0.5 * v * (1.0 + jnp.tanh(_SQRT_2_OVER_PI * (v + 0.044715 * v ** 3)))

    def conv1(v, w, b):
        return jnp.einsum("ncdhw,oc->nodhw", v, w, precision=HI) + b.reshape(1, -1, 1, 1, 1)

    def conv3(v, w, b=None):
        y = lax.conv_general_dilated(v, w, (1, 1, 1), [(1, 1)] * 3,
                                     dimension_numbers=("NCDHW", "OIDHW", "NCDHW"),
                                     precision=HI)
        return y if b is None else y + b.reshape(1, -1, 1, 1, 1)

    cin = x.shape[1]
    chid = p["w_cv"].shape[0]
    g_in, g_hid = cin // dimgroup, chid // dimgroup

    c11 = conv1(gelu(gn(x, p["g1_gamma"], p["g1_beta"], g_in)), p["w_c11"], p["b_c11"])
    x1 = conv1(gelu(gn(x, p["gc_gamma"], p["gc_beta"], g_in)), p["w_cv"], p["b_cv"])
    e1 = conv1(gelu(gn(x1, p["ge1_gamma"], p["ge1_beta"], g_hid)), p["w_e1"], p["b_e1"])
    e2 = conv3(gelu(gn(x1, p["ge2_gamma"], p["ge2_beta"], g_hid)), p["w_e2"], p["b_e2"])
    merge = jnp.concatenate([e1, e2], axis=1)
    avg = jnp.mean(merge, axis=1, keepdims=True)
    mx = jnp.max(merge, axis=1, keepdims=True)
    sa = jax.nn.sigmoid(conv3(jnp.concatenate([avg, mx], axis=1), p["w_sa"]))
    return sa * merge + c11


# --------------------------------------------------------------------------
if __name__ == "__main__":
    N, CIN, COUT, DIMGROUP = 2, 8, 16, 4
    D, H, W = 4, 8, 8                      # D*H*W = 256 -> lane-dense (multiple of 128)
    CHID = COUT // 4

    ks = jax.random.split(jax.random.PRNGKey(0), 18)

    def w_init(k, shape, fan_in):
        return jax.random.normal(k, shape, jnp.float32) / np.sqrt(fan_in)

    params = {
        # Conv1x1 residual branch: GN(cin//dimgroup) -> GELU -> Conv3d(cin, 2*cout, 1)
        "g1_gamma": 1.0 + 0.1 * jax.random.normal(ks[0], (CIN,), jnp.float32),
        "g1_beta": 0.1 * jax.random.normal(ks[1], (CIN,), jnp.float32),
        "w_c11": w_init(ks[2], (2 * COUT, CIN), CIN),
        "b_c11": 0.1 * jax.random.normal(ks[3], (2 * COUT,), jnp.float32),
        # ConvBlock.conv: GN(cin//dimgroup) -> GELU -> Conv3d(cin, chid, 1)
        "gc_gamma": 1.0 + 0.1 * jax.random.normal(ks[4], (CIN,), jnp.float32),
        "gc_beta": 0.1 * jax.random.normal(ks[5], (CIN,), jnp.float32),
        "w_cv": w_init(ks[6], (CHID, CIN), CIN),
        "b_cv": 0.1 * jax.random.normal(ks[7], (CHID,), jnp.float32),
        # ConvBlock.expand1: GN(chid//dimgroup) -> GELU -> Conv3d(chid, cout, 1)
        "ge1_gamma": 1.0 + 0.1 * jax.random.normal(ks[8], (CHID,), jnp.float32),
        "ge1_beta": 0.1 * jax.random.normal(ks[9], (CHID,), jnp.float32),
        "w_e1": w_init(ks[10], (COUT, CHID), CHID),
        "b_e1": 0.1 * jax.random.normal(ks[11], (COUT,), jnp.float32),
        # ConvBlock.expand2: GN(chid//dimgroup) -> GELU -> Conv3d(chid, cout, 3, pad=1)
        "ge2_gamma": 1.0 + 0.1 * jax.random.normal(ks[12], (CHID,), jnp.float32),
        "ge2_beta": 0.1 * jax.random.normal(ks[13], (CHID,), jnp.float32),
        "w_e2": w_init(ks[14], (COUT, CHID, 3, 3, 3), CHID * 27),
        "b_e2": 0.1 * jax.random.normal(ks[15], (COUT,), jnp.float32),
        # SpatialAttention: Conv3d(2, 1, 3, pad=1, bias=False)
        "w_sa": w_init(ks[16], (1, 2, 3, 3, 3), 2 * 27),
    }
    x = jax.random.normal(ks[17], (N, CIN, D, H, W), jnp.float32)

    out = jax.block_until_ready(basic_block_forward(x, params, dimgroup=DIMGROUP))
    ref = jax.block_until_ready(basic_block_ref(x, params, dimgroup=DIMGROUP))
    np.testing.assert_allclose(np.asarray(out), np.asarray(ref), rtol=1e-2, atol=1e-2)
    print("KERNEL_OK")
</pallas_src>

<mosaic_0001>
module attributes {stable_mosaic.version = 11 : i64} {
  func.func @_gn_gelu_conv1x1_kernel(%arg0: i32, %arg1: memref<1x8x256xf32, #tpu.memory_space<vmem>>, %arg2: memref<8x1xf32, #tpu.memory_space<vmem>>, %arg3: memref<8x1xf32, #tpu.memory_space<vmem>>, %arg4: memref<32x8xf32, #tpu.memory_space<vmem>>, %arg5: memref<32x1xf32, #tpu.memory_space<vmem>>, %arg6: memref<1x32x256xf32, #tpu.memory_space<vmem>>) attributes {dimension_semantics = [#tpu.dimension_semantics<parallel>], iteration_bounds = array<i64: 2>, scalar_prefetch = 0 : i64, scratch_operands = 0 : i64, tpu.core_type = #tpu.core_type<tc>, window_params = [{transform_indices = @transform_0, window_bounds = array<i64: 1, 8, 256>}, {pipeline_mode = #tpu.pipeline_mode<synchronous>, transform_indices = @transform_1, window_bounds = array<i64: 8, 1>}, {pipeline_mode = #tpu.pipeline_mode<synchronous>, transform_indices = @transform_2, window_bounds = array<i64: 8, 1>}, {pipeline_mode = #tpu.pipeline_mode<synchronous>, transform_indices = @transform_3, window_bounds = array<i64: 32, 8>}, {pipeline_mode = #tpu.pipeline_mode<synchronous>, transform_indices = @transform_4, window_bounds = array<i64: 32, 1>}, {transform_indices = @transform_5, window_bounds = array<i64: 1, 32, 256>}]} {
    %c0 = arith.constant 0 : index
    %c0_0 = arith.constant 0 : index
    %c0_1 = arith.constant 0 : index
    %0 = vector.load %arg1[%c0, %c0_0, %c0_1] : memref<1x8x256xf32, #tpu.memory_space<vmem>>, vector<1x8x256xf32>
    %1 = vector.shape_cast %0 : vector<1x8x256xf32> to vector<8x256xf32>
    %c0_2 = arith.constant 0 : index
    %c0_3 = arith.constant 0 : index
    %2 = vector.load %arg2[%c0_2, %c0_3] : memref<8x1xf32, #tpu.memory_space<vmem>>, vector<8x1xf32>
    %c0_4 = arith.constant 0 : index
    %c0_5 = arith.constant 0 : index
    %3 = vector.load %arg3[%c0_4, %c0_5] : memref<8x1xf32, #tpu.memory_space<vmem>>, vector<8x1xf32>
    %4 = tpu.iota {dimensions = array<i32: 0>} : vector<8x1xi32>
    %cst = arith.constant 0.000000e+00 : f32
    %5 = vector.broadcast %cst : f32 to vector<8x1xf32>
    %cst_6 = arith.constant 0.000000e+00 : f32
    %6 = vector.broadcast %cst_6 : f32 to vector<8x1xf32>
    %7 = vector.extract_strided_slice %1 {offsets = [0, 0], sizes = [4, 256], strides = [1, 1]} : vector<8x256xf32> to vector<4x256xf32>
    %cst_7 = arith.constant dense<0.000000e+00> : vector<4xf32>
    %8 = vector.multi_reduction <add>, %7, %cst_7 [1] : vector<4x256xf32> to vector<4xf32>
    %9 = vector.shape_cast %8 : vector<4xf32> to vector<4x1xf32>
    %cst_8 = arith.constant dense<0.000000e+00> : vector<1xf32>
    %10 = vector.multi_reduction <add>, %9, %cst_8 [0] : vector<4x1xf32> to vector<1xf32>
    %11 = vector.shape_cast %10 : vector<1xf32> to vector<1x1xf32>
    %cst_9 = arith.constant 1.024000e+03 : f32
    %12 = vector.broadcast %cst_9 : f32 to vector<1x1xf32>
    %13 = arith.divf %11, %12 : vector<1x1xf32>
    %14 = vector.broadcast %13 : vector<1x1xf32> to vector<4x256xf32>
    %15 = arith.subf %7, %14 : vector<4x256xf32>
    %16 = arith.mulf %15, %15 : vector<4x256xf32>
    %cst_10 = arith.constant dense<0.000000e+00> : vector<4xf32>
    %17 = vector.multi_reduction <add>, %16, %cst_10 [1] : vector<4x256xf32> to vector<4xf32>
    %18 = vector.shape_cast %17 : vector<4xf32> to vector<4x1xf32>
    %cst_11 = arith.constant dense<0.000000e+00> : vector<1xf32>
    %19 = vector.multi_reduction <add>, %18, %cst_11 [0] : vector<4x1xf32> to vector<1xf32>
    %20 = vector.shape_cast %19 : vector<1xf32> to vector<1x1xf32>
    %cst_12 = arith.constant 1.024000e+03 : f32
    %21 = vector.broadcast %cst_12 : f32 to vector<1x1xf32>
    %22 = arith.divf %20, %21 : vector<1x1xf32>
    %cst_13 = arith.constant 9.99999974E-6 : f32
    %23 = vector.broadcast %cst_13 : f32 to vector<1x1xf32>
    %24 = arith.addf %22, %23 : vector<1x1xf32>
    %25 = math.rsqrt %24 : vector<1x1xf32>
    %c0_i32 = arith.constant 0 : i32
    %26 = vector.broadcast %c0_i32 : i32 to vector<8x1xi32>
    %27 = arith.cmpi sge, %4, %26 : vector<8x1xi32>
    %c4_i32 = arith.constant 4 : i32
    %28 = vector.broadcast %c4_i32 : i32 to vector<8x1xi32>
    %29 = arith.cmpi slt, %4, %28 : vector<8x1xi32>
    %30 = arith.andi %27, %29 : vector<8x1xi1>
    %31 = vector.shape_cast %13 : vector<1x1xf32> to vector<1x1xf32>
    %32 = vector.broadcast %31 : vector<1x1xf32> to vector<8x1xf32>
    %33 = arith.select %30, %32, %5 : vector<8x1xi1>, vector<8x1xf32>
    %34 = vector.shape_cast %25 : vector<1x1xf32> to vector<1x1xf32>
    %35 = vector.broadcast %34 : vector<1x1xf32> to vector<8x1xf32>
    %36 = arith.select %30, %35, %6 : vector<8x1xi1>, vector<8x1xf32>
    %37 = vector.extract_strided_slice %1 {offsets = [4, 0], sizes = [4, 256], strides = [1, 1]} : vector<8x256xf32> to vector<4x256xf32>
    %cst_14 = arith.constant dense<0.000000e+00> : vector<4xf32>
    %38 = vector.multi_reduction <add>, %37, %cst_14 [1] : vector<4x256xf32> to vector<4xf32>
    %39 = vector.shape_cast %38 : vector<4xf32> to vector<4x1xf32>
    %cst_15 = arith.constant dense<0.000000e+00> : vector<1xf32>
    %40 = vector.multi_reduction <add>, %39, %cst_15 [0] : vector<4x1xf32> to vector<1xf32>
    %41 = vector.shape_cast %40 : vector<1xf32> to vector<1x1xf32>
    %cst_16 = arith.constant 1.024000e+03 : f32
    %42 = vector.broadcast %cst_16 : f32 to vector<1x1xf32>
    %43 = arith.divf %41, %42 : vector<1x1xf32>
    %44 = vector.broadcast %43 : vector<1x1xf32> to vector<4x256xf32>
    %45 = arith.subf %37, %44 : vector<4x256xf32>
    %46 = arith.mulf %45, %45 : vector<4x256xf32>
    %cst_17 = arith.constant dense<0.000000e+00> : vector<4xf32>
    %47 = vector.multi_reduction <add>, %46, %cst_17 [1] : vector<4x256xf32> to vector<4xf32>
    %48 = vector.shape_cast %47 : vector<4xf32> to vector<4x1xf32>
    %cst_18 = arith.constant dense<0.000000e+00> : vector<1xf32>
    %49 = vector.multi_reduction <add>, %48, %cst_18 [0] : vector<4x1xf32> to vector<1xf32>
    %50 = vector.shape_cast %49 : vector<1xf32> to vector<1x1xf32>
    %cst_19 = arith.constant 1.024000e+03 : f32
    %51 = vector.broadcast %cst_19 : f32 to vector<1x1xf32>
    %52 = arith.divf %50, %51 : vector<1x1xf32>
    %cst_20 = arith.constant 9.99999974E-6 : f32
    %53 = vector.broadcast %cst_20 : f32 to vector<1x1xf32>
    %54 = arith.addf %52, %53 : vector<1x1xf32>
    %55 = math.rsqrt %54 : vector<1x1xf32>
    %c4_i32_21 = arith.constant 4 : i32
    %56 = vector.broadcast %c4_i32_21 : i32 to vector<8x1xi32>
    %57 = arith.cmpi sge, %4, %56 : vector<8x1xi32>
    %c8_i32 = arith.constant 8 : i32
    %58 = vector.broadcast %c8_i32 : i32 to vector<8x1xi32>
    %59 = arith.cmpi slt, %4, %58 : vector<8x1xi32>
    %60 = arith.andi %57, %59 : vector<8x1xi1>
    %61 = vector.shape_cast %43 : vector<1x1xf32> to vector<1x1xf32>
    %62 = vector.broadcast %61 : vector<1x1xf32> to vector<8x1xf32>
    %63 = arith.select %60, %62, %33 : vector<8x1xi1>, vector<8x1xf32>
    %64 = vector.shape_cast %55 : vector<1x1xf32> to vector<1x1xf32>
    %65 = vector.broadcast %64 : vector<1x1xf32> to vector<8x1xf32>
    %66 = arith.select %60, %65, %36 : vector<8x1xi1>, vector<8x1xf32>
    %67 = vector.broadcast %63 : vector<8x1xf32> to vector<8x256xf32>
    %68 = arith.subf %1, %67 : vector<8x256xf32>
    %69 = vector.broadcast %66 : vector<8x1xf32> to vector<8x256xf32>
    %70 = arith.mulf %68, %69 : vector<8x256xf32>
    %71 = vector.broadcast %2 : vector<8x1xf32> to vector<8x256xf32>
    %72 = arith.mulf %70, %71 : vector<8x256xf32>
    %73 = vector.broadcast %3 : vector<8x1xf32> to vector<8x256xf32>
    %74 = arith.addf %72, %73 : vector<8x256xf32>
    %cst_22 = arith.constant 5.000000e-01 : f32
    %75 = vector.broadcast %cst_22 : f32 to vector<8x256xf32>
    %76 = arith.mulf %75, %74 : vector<8x256xf32>
    %cst_23 = arith.constant 4.471500e-02 : f32
    %77 = vector.broadcast %cst_23 : f32 to vector<8x256xf32>
    %78 = arith.mulf %77, %74 : vector<8x256xf32>
    %79 = arith.mulf %78, %74 : vector<8x256xf32>
    %80 = arith.mulf %79, %74 : vector<8x256xf32>
    %81 = arith.addf %74, %80 : vector<8x256xf32>
    %cst_24 = arith.constant 0.797884583 : f32
    %82 = vector.broadcast %cst_24 : f32 to vector<8x256xf32>
    %83 = arith.mulf %82, %81 : vector<8x256xf32>
    %84 = math.tanh %83 : vector<8x256xf32>
    %cst_25 = arith.constant 1.000000e+00 : f32
    %85 = vector.broadcast %cst_25 : f32 to vector<8x256xf32>
    %86 = arith.addf %85, %84 : vector<8x256xf32>
    %87 = arith.mulf %76, %86 : vector<8x256xf32>
    %c0_26 = arith.constant 0 : index
    %c0_27 = arith.constant 0 : index
    %88 = vector.load %arg4[%c0_26, %c0_27] : memref<32x8xf32, #tpu.memory_space<vmem>>, vector<32x8xf32>
    %cst_28 = arith.constant dense<0.000000e+00> : vector<32x256xf32>
    %89 = tpu.matmul %88, %87, %cst_28 {dimension_numbers = #tpu.dot_dimension_numbers<[1], [0], [0], [1], [0, 0, 1, 1], [], []>} : vector<32x8xf32>, vector<8x256xf32>, vector<32x256xf32> -> vector<32x256xf32>
    %c0_29 = arith.constant 0 : index
    %c0_30 = arith.constant 0 : index
    %90 = vector.load %arg5[%c0_29, %c0_30] : memref<32x1xf32, #tpu.memory_space<vmem>>, vector<32x1xf32>
    %91 = vector.broadcast %90 : vector<32x1xf32> to vector<32x256xf32>
    %92 = arith.addf %89, %91 : vector<32x256xf32>
    %c0_31 = arith.constant 0 : index
    %c0_32 = arith.constant 0 : index
    %c0_33 = arith.constant 0 : index
    %93 = vector.load %arg6[%c0_31, %c0_32, %c0_33] : memref<1x32x256xf32, #tpu.memory_space<vmem>>, vector<1x32x256xf32>
    %94 = vector.shape_cast %93 : vector<1x32x256xf32> to vector<32x256xf32>
    %95 = vector.shape_cast %92 : vector<32x256xf32> to vector<1x32x256xf32>
    tpu.vector_store %arg6[%c0_31, %c0_32, %c0_33], %95 {strides = array<i32>} : memref<1x32x256xf32, #tpu.memory_space<vmem>>, vector<1x32x256xf32>,
    return
  }
  func.func @transform_0(%arg0: i32) -> (i32, i32, i32) {
    %c0_i32 = arith.constant 0 : i32
    %c0_i32_0 = arith.constant 0 : i32
    %c0_i32_1 = arith.constant 0 : i32
    return %arg0, %c0_i32, %c0_i32_0 : i32, i32, i32
  }
  func.func @transform_1(%arg0: i32) -> (i32, i32) {
    %c0_i32 = arith.constant 0 : i32
    %c0_i32_0 = arith.constant 0 : i32
    %c0_i32_1 = arith.constant 0 : i32
    return %c0_i32, %c0_i32_0 : i32, i32
  }
  func.func @transform_2(%arg0: i32) -> (i32, i32) {
    %c0_i32 = arith.constant 0 : i32
    %c0_i32_0 = arith.constant 0 : i32
    %c0_i32_1 = arith.constant 0 : i32
    return %c0_i32, %c0_i32_0 : i32, i32
  }
  func.func @transform_3(%arg0: i32) -> (i32, i32) {
    %c0_i32 = arith.constant 0 : i32
    %c0_i32_0 = arith.constant 0 : i32
    %c0_i32_1 = arith.constant 0 : i32
    return %c0_i32, %c0_i32_0 : i32, i32
  }
  func.func @transform_4(%arg0: i32) -> (i32, i32) {
    %c0_i32 = arith.constant 0 : i32
    %c0_i32_0 = arith.constant 0 : i32
    %c0_i32_1 = arith.constant 0 : i32
    return %c0_i32, %c0_i32_0 : i32, i32
  }
  func.func @transform_5(%arg0: i32) -> (i32, i32, i32) {
    %c0_i32 = arith.constant 0 : i32
    %c0_i32_0 = arith.constant 0 : i32
    %c0_i32_1 = arith.constant 0 : i32
    return %arg0, %c0_i32, %c0_i32_0 : i32, i32, i32
  }
}

</mosaic_0001>

<llo_original>
// kernel: tpu_custom_call.1
$region0: #{tpu_custom_call.1}
  #allocation0 [shape = 'u32[]', space=smem, size = 0x4, offset = 0x4, fixed_abs, tag = 'smem constant byte address 0x4 - core index']
  #allocation1 [shape = 'u32[72,128]{1,0:T(1,128)}', space=vmem, size = 0x9000, scoped, tag = 'internal scratch']
  %s0 = inlined_call_operand.vmem [shape: f32[2,8,256], index: 0, kind: input, shape index: {}]
  %s1 = inlined_call_operand.vmem [shape: f32[8,1], index: 1, kind: input, shape index: {}]
  %s2 = inlined_call_operand.vmem [shape: f32[8,1], index: 2, kind: input, shape index: {}]
  %s3 = inlined_call_operand.vmem [shape: f32[32,8], index: 3, kind: input, shape index: {}]
  %s4 = inlined_call_operand.vmem [shape: f32[32,1], index: 4, kind: input, shape index: {}]
  %s5 = inlined_call_operand.hbm [shape: f32[2,32,256], index: 5, kind: output, shape index: {}]
  %s6 = sld [smem:[#allocation0]]
  $region53: #{tpu_custom_call.1} parent=0
    _
  %s8 = ssub.s32 1, %s6
  %s9 = scalar_select 0, %s8, %s6
  $region1: #{tpu_custom_call.1} parent=0
    #allocation2 [shape = 'u8[65536]{0}', space=vmem, size = 0x10000, scoped, tag = 'output window, operand 0']
    #allocation3 [shape = 's32[2]{0}', space=sflag, size = 0x8, scoped, tag = 'scoped memory for tpu_custom_call.1']
    %10 = vsyncpa [#allocation3], 0
    %s11 = scalar_lea.sflag [#allocation3], 1
    %12 = vsyncpa %s11, 0
    loop: start=0, step=1, limit=4
    $region2: #{tpu_custom_call.1} parent=1 // loop_pre_header
      _
    $region3: #{tpu_custom_call.1} parent=1 // loop_header
      %s14 = sphi 0, %s18
      %p15 = scmp.ge.s32.totalorder %s14, 4
      %s24 = sphi 0, %s26
      %s27 = sphi 0, %s24
      %s28 = sphi 0, %s27
      %s44 = sphi 0, %s28
      %s48 = sphi 0, %s48
      %s50 = sphi 0, %s48
      %s51 = sphi 0, %s50
      %s65 = sphi 0, %s51
      %s69 = sphi 0, %s69
      %s71 = sphi 0, %s69
      %s72 = sphi 0, %s71
      %s86 = sphi 0, %s72
      %s90 = sphi 0, %s90
      %s92 = sphi 0, %s90
      %s93 = sphi 0, %s92
      %s107 = sphi 0, %s93
      %s111 = sphi 0, %s111
      %s113 = sphi 0, %s111
      %s114 = sphi 0, %s113
      %s128 = sphi 0, %s114
      %s134 = sphi 0, %s136
      %s137 = sphi 0, %s134
      %s138 = sphi 0, %s137
      %s154 = sphi 0, %s138
    $region4: #{tpu_custom_call.1} parent=1 // loop_header_branch
      %17 = sbr.rel (%p15) target = $region8
    $region5: #{tpu_custom_call.1} parent=1 // loop_body
      %s19 = ssub.s32 %s14, 1
      %s20 = ssub.s32 %s14, 2
      %s21 = sadd.s32 %s14, 1
      %s22 = ssub.s32 %s14, %s21
      %p23 = scmp.eq.s32.totalorder %s22, 0
      %s25 = sadd.s32 %s24, 1
      %s26 = scalar_select %p23, %s24, %s25
      %p29 = pneg %p23
      %p30 = scmp.eq.s32.totalorder %s14, 1
      %p31 = por %p29, %p30
      %p32 = scmp.ne.s32.totalorder %s24, %s27
      %p33 = scmp.eq.s32.totalorder %s14, 0
      %p34 = por %p32, %p33
      %p35 = scmp.ne.s32.totalorder %s24, %s27
      %p36 = scmp.eq.s32.totalorder %s19, 1
      %p37 = por %p35, %p36
      %p38 = scmp.ne.s32.totalorder %s27, %s28
      %p39 = scmp.eq.s32.totalorder %s19, 0
      %p40 = por %p38, %p39
      %p41 = scmp.ne.s32.totalorder %s27, %s28
      %p42 = scmp.eq.s32.totalorder %s20, 1
      %p43 = por %p41, %p42
      %p45 = scmp.ne.s32.totalorder %s28, %s44
      %p46 = scmp.eq.s32.totalorder %s20, 0
      %p47 = por %p45, %p46
      %s49 = sadd.s32 %s48, 1
      %p52 = scmp.eq.s32.totalorder %s14, 1
      %p53 = scmp.ne.s32.totalorder %s48, %s50
      %p54 = scmp.eq.s32.totalorder %s14, 0
      %p55 = por %p53, %p54
      %p56 = scmp.ne.s32.totalorder %s48, %s50
      %p57 = scmp.eq.s32.totalorder %s19, 1
      %p58 = por %p56, %p57
      %p59 = scmp.ne.s32.totalorder %s50, %s51
      %p60 = scmp.eq.s32.totalorder %s19, 0
      %p61 = por %p59, %p60
      %p62 = scmp.ne.s32.totalorder %s50, %s51
      %p63 = scmp.eq.s32.totalorder %s20, 1
      %p64 = por %p62, %p63
      %p66 = scmp.ne.s32.totalorder %s51, %s65
      %p67 = scmp.eq.s32.totalorder %s20, 0
      %p68 = por %p66, %p67
      %s70 = sadd.s32 %s69, 1
      %p73 = scmp.eq.s32.totalorder %s14, 1
      %p74 = scmp.ne.s32.totalorder %s69, %s71
      %p75 = scmp.eq.s32.totalorder %s14, 0
      %p76 = por %p74, %p75
      %p77 = scmp.ne.s32.totalorder %s69, %s71
      %p78 = scmp.eq.s32.totalorder %s19, 1
      %p79 = por %p77, %p78
      %p80 = scmp.ne.s32.totalorder %s71, %s72
      %p81 = scmp.eq.s32.totalorder %s19, 0
      %p82 = por %p80, %p81
      %p83 = scmp.ne.s32.totalorder %s71, %s72
      %p84 = scmp.eq.s32.totalorder %s20, 1
      %p85 = por %p83, %p84
      %p87 = scmp.ne.s32.totalorder %s72, %s86
      %p88 = scmp.eq.s32.totalorder %s20, 0
      %p89 = por %p87, %p88
      %s91 = sadd.s32 %s90, 1
      %p94 = scmp.eq.s32.totalorder %s14, 1
      %p95 = scmp.ne.s32.totalorder %s90, %s92
      %p96 = scmp.eq.s32.totalorder %s14, 0
      %p97 = por %p95, %p96
      %p98 = scmp.ne.s32.totalorder %s90, %s92
      %p99 = scmp.eq.s32.totalorder %s19, 1
      %p100 = por %p98, %p99
      %p101 = scmp.ne.s32.totalorder %s92, %s93
      %p102 = scmp.eq.s32.totalorder %s19, 0
      %p103 = por %p101, %p102
      %p104 = scmp.ne.s32.totalorder %s92, %s93
      %p105 = scmp.eq.s32.totalorder %s20, 1
      %p106 = por %p104, %p105
      %p108 = scmp.ne.s32.totalorder %s93, %s107
      %p109 = scmp.eq.s32.totalorder %s20, 0
      %p110 = por %p108, %p109
      %s112 = sadd.s32 %s111, 1
      %p115 = scmp.eq.s32.totalorder %s14, 1
      %p116 = scmp.ne.s32.totalorder %s111, %s113
      %p117 = scmp.eq.s32.totalorder %s14, 0
      %p118 = por %p116, %p117
      %p119 = scmp.ne.s32.totalorder %s111, %s113
      %p120 = scmp.eq.s32.totalorder %s19, 1
      %p121 = por %p119, %p120
      %p122 = scmp.ne.s32.totalorder %s113, %s114
      %p123 = scmp.eq.s32.totalorder %s19, 0
      %p124 = por %p122, %p123
      %p125 = scmp.ne.s32.totalorder %s113, %s114
      %p126 = scmp.eq.s32.totalorder %s20, 1
      %p127 = por %p125, %p126
      %p129 = scmp.ne.s32.totalorder %s114, %s128
      %p130 = scmp.eq.s32.totalorder %s20, 0
      %p131 = por %p129, %p130
      %s132 = ssub.s32 %s14, %s21
      %p133 = scmp.eq.s32.totalorder %s132, 0
      %s135 = sadd.s32 %s134, 1
      %s136 = scalar_select %p133, %s134, %s135
      %p139 = pneg %p133
      %p140 = scmp.eq.s32.totalorder %s14, 1
      %p141 = por %p139, %p140
      %p142 = scmp.ne.s32.totalorder %s134, %s137
      %p143 = scmp.eq.s32.totalorder %s14, 0
      %p144 = por %p142, %p143
      %p145 = scmp.ne.s32.totalorder %s134, %s137
      %p146 = scmp.eq.s32.totalorder %s19, 1
      %p147 = por %p145, %p146
      %p148 = scmp.ne.s32.totalorder %s137, %s138
      %p149 = scmp.eq.s32.totalorder %s19, 0
      %p150 = por %p148, %p149
      %p151 = scmp.ne.s32.totalorder %s137, %s138
      %p152 = scmp.eq.s32.totalorder %s20, 1
      %p153 = por %p151, %p152
      %p155 = scmp.ne.s32.totalorder %s138, %s154
      %p156 = scmp.eq.s32.totalorder %s20, 0
      %p157 = por %p155, %p156
      %p158 = scmp.le.s32.totalorder 1, %s14
      %p159 = scmp.lt.s32.totalorder %s14, 3
      %p160 = pnand %p158, %p159
      %p161 = pneg %p160
      // Predicated region
      $region9: #{tpu_custom_call.1} parent=5 // pred_check
        _
      $region10: #{tpu_custom_call.1} parent=5 // pred_check_branch
        %163 = sbr.rel (%p160) target = $region12
      $region11: #{tpu_custom_call.1} parent=5 // pred_region
        %s164 = ssub.s32 %s14, 1
        // Predicated region
        $region13: #{tpu_custom_call.1} parent=11 // pred_check
          %p165 = pneg %p61
        $region14: #{tpu_custom_call.1} parent=11 // pred_check_branch
          %167 = sbr.rel (%p165) target = $region16
        $region15: #{tpu_custom_call.1} parent=11 // pred_region
          _
        $region16: #{tpu_custom_call.1} parent=11 // pred_fallthru
          _
        // Predicated region
        $region17: #{tpu_custom_call.1} parent=11 // pred_check
          %p168 = pneg %p82
        $region18: #{tpu_custom_call.1} parent=11 // pred_check_branch
          %170 = sbr.rel (%p168) target = $region20
        $region19: #{tpu_custom_call.1} parent=11 // pred_region
          _
        $region20: #{tpu_custom_call.1} parent=11 // pred_fallthru
          _
        // Predicated region
        $region21: #{tpu_custom_call.1} parent=11 // pred_check
          %p171 = pneg %p103
        $region22: #{tpu_custom_call.1} parent=11 // pred_check_branch
          %173 = sbr.rel (%p171) target = $region24
        $region23: #{tpu_custom_call.1} parent=11 // pred_region
          _
        $region24: #{tpu_custom_call.1} parent=11 // pred_fallthru
          _
        // Predicated region
        $region25: #{tpu_custom_call.1} parent=11 // pred_check
          %p174 = pneg %p124
        $region26: #{tpu_custom_call.1} parent=11 // pred_check_branch
          %176 = sbr.rel (%p174) target = $region28
        $region27: #{tpu_custom_call.1} parent=11 // pred_region
          _
        $region28: #{tpu_custom_call.1} parent=11 // pred_fallthru
          _
      $region12: #{tpu_custom_call.1} parent=5 // pred_fallthru
        _
      %p177 = scmp.lt.s32.totalorder %s14, 2
      // Predicated region
      $region29: #{tpu_custom_call.1} parent=5 // pred_check
        %p178 = pneg %p177
      $region30: #{tpu_custom_call.1} parent=5 // pred_check_branch
        %180 = sbr.rel (%p178) target = $region32
      $region31: #{tpu_custom_call.1} parent=5 // pred_region
        // Predicated region
        $region33: #{tpu_custom_call.1} parent=31 // pred_check
          %p181 = pneg %p34
        $region34: #{tpu_custom_call.1} parent=31 // pred_check_branch
          %183 = sbr.rel (%p181) target = $region36
        $region35: #{tpu_custom_call.1} parent=31 // pred_region
          %p184 = scmp.lt.s32.totalorder %s14, 1
          %s185 = scalar_select %p184, %s14, 1
          %s186 = smul.addr %s185, 2
          %s187 = smul.addr %s186, 8
          %s188 = scalar_lea.vmem %s0, %s187
        $region36: #{tpu_custom_call.1} parent=31 // pred_fallthru
          _
      $region32: #{tpu_custom_call.1} parent=5 // pred_fallthru
        _
      %p189 = scmp.le.s32.totalorder 1, %s14
      %p190 = scmp.lt.s32.totalorder %s14, 3
      %p191 = pnand %p189, %p190
      %p192 = pneg %p191
      // Predicated region
      $region37: #{tpu_custom_call.1} parent=5 // pred_check
        _
      $region38: #{tpu_custom_call.1} parent=5 // pred_check_branch
        %194 = sbr.rel (%p191) target = $region40
      $region39: #{tpu_custom_call.1} parent=5 // pred_region
        %s195 = ssub.s32 %s14, 1
        %p196 = scmp.lt.s32.totalorder %s19, 1
        %s197 = scalar_select %p196, %s19, 1
        %s198 = smul.addr %s197, 2
        %s199 = smul.addr %s198, 8
        %s200 = scalar_lea.vmem %s0, %s199
        %p201 = pneg %p40
        %p202 = pneg %p37
        %p203 = pneg %p61
        %p204 = pneg %p58
        %p205 = pneg %p82
        %p206 = pneg %p79
        %p207 = pneg %p103
        %p208 = pneg %p100
        %p209 = pneg %p124
        %p210 = pneg %p121
        %p211 = pneg %p150
        %p212 = pneg %p147
        %s213 = sand.u32 %s137, 1
        %s214 = scalar_lea.sflag [#allocation3], %s213
        %s215 = sand.u32 %s137, 1
        %s216 = smul.addr %s215, 64
        %s217 = scalar_lea.vmem [#allocation2], %s216
        %p218 = scmp.lt.s32.totalorder %s19, 1
        %s219 = scalar_select %p218, %s19, 1
        %s220 = smul.addr %s219, 2
        %s221 = smul.addr %s220, 8
        %s222 = scalar_lea.vmem %s0, %s221
        %v223 = vld [vmem:[%s222] sm:$0xff]
        %v224 = vld [vmem:[%s222 + $0x8] sm:$0xff]
        %v225 = vld [vmem:[%s1] sm:$0xff]
        %v226 = vld [vmem:[%s2] sm:$0xff]
        %v227 = vlaneseq
        %v228 = vshrl.u32 %v227, 7
        %vm229 = vcmask 1043456
        %v230 = vsel %vm229, %v223, 0.0
        %v231 = vsel %vm229, %v224, 0.0
        %v232 = vadd.f32 %v230, %v231
        %233 = vadd.xlane.f32.xlu0 %v232
        %v234 = vpop.xlane.xlu0 %233
        %v235 = vsel %vm229, %v234, 0.0
        %v236 = vrot.slane %v235, 4
        %v237 = vadd.f32 %v235, %v236
        %v238 = vrot.slane %v237, 2
        %v239 = vadd.f32 %v237, %v238
        %v240 = vrot.slane %v239, 1
        %v241 = vadd.f32 %v239, %v240
        %v242 = vrcp.pop 1024.0
        %v243 = vmul.f32 1024.0, %v242
        %v244 = vsub.f32 1.0, %v243
        %v245 = vmul.f32 %v242, %v244
        %v246 = vadd.f32 %v242, %v245
        %vm247 = vweird.f32 %v242
        %v248 = vsel %vm247, %v242, %v246
        %v249 = vmul.f32 %v241, %v248
        %v250 = vsub.f32 %v223, %v249
        %v251 = vsub.f32 %v224, %v249
        %v252 = vmul.f32 %v250, %v250
        %v253 = vmul.f32 %v251, %v251
        %v254 = vsel %vm229, %v252, 0.0
        %v255 = vsel %vm229, %v253, 0.0
        %v256 = vadd.f32 %v254, %v255
        %257 = vadd.xlane.f32.xlu0 %v256
        %v258 = vpop.xlane.xlu0 %257
        %v259 = vsel %vm229, %v258, 0.0
        %v260 = vrot.slane %v259, 4
        %v261 = vadd.f32 %v259, %v260
        %v262 = vrot.slane %v261, 2
        %v263 = vadd.f32 %v261, %v262
        %v264 = vrot.slane %v263, 1
        %v265 = vadd.f32 %v263, %v264
        %v266 = vmul.f32 %v265, %v248
        %v267 = vadd.f32 %v266, 1e-05
        %v268 = vrsqrt.pop %v267
        %v269 = vmul.f32 %v268, %v267
        %v270 = vmul.f32 %v269, %v268
        %v271 = vmul.f32 0.5, %v270
        %v272 = vsub.f32 1.5, %v271
        %v273 = vmul.f32 %v268, %v272
        %vm274 = vweird.f32 %v267
        %vm275 = vweird.f32 %v268
        %vm276 = vmor %vm274, %vm275
        %v277 = vsel %vm276, %v268, %v273
        %vm278 = vcmp.ge.s32.totalorder %v228, 0
        %vm279 = vcmp.lt.s32.totalorder %v228, 4
        %vm280 = vmand %vm278, %vm279
        %v281 = vsel %vm280, %v249, 0.0
        %v282 = vsel %vm280, %v277, 0.0
        %vm283 = vcmask 1047556
        %v284 = vsel %vm283, %v223, 0.0
        %v285 = vsel %vm283, %v224, 0.0
        %v286 = vadd.f32 %v284, %v285
        %287 = vadd.xlane.f32.xlu0 %v286
        %v288 = vpop.xlane.xlu0 %287
        %v290 = vrot.slane %v288, 4
        %v292 = vsel %vm229, %v290, 0.0
        %v293 = vrot.slane %v292, 4
        %v294 = vadd.f32 %v292, %v293
        %v295 = vrot.slane %v294, 2
        %v296 = vadd.f32 %v294, %v295
        %v297 = vrot.slane %v296, 1
        %v298 = vadd.f32 %v296, %v297
        %v299 = vmul.f32 %v298, %v248
        %v300 = vsub.f32 %v223, %v299
        %v301 = vsub.f32 %v224, %v299
        %v302 = vmul.f32 %v300, %v300
        %v303 = vmul.f32 %v301, %v301
        %v304 = vsel %vm283, %v302, 0.0
        %v305 = vsel %vm283, %v303, 0.0
        %v306 = vadd.f32 %v304, %v305
        %307 = vadd.xlane.f32.xlu0 %v306
        %v308 = vpop.xlane.xlu0 %307
        %v310 = vrot.slane %v308, 4
        %v312 = vsel %vm229, %v310, 0.0
        %v313 = vrot.slane %v312, 4
        %v314 = vadd.f32 %v312, %v313
        %v315 = vrot.slane %v314, 2
        %v316 = vadd.f32 %v314, %v315
        %v317 = vrot.slane %v316, 1
        %v318 = vadd.f32 %v316, %v317
        %v319 = vmul.f32 %v318, %v248
        %v320 = vadd.f32 %v319, 1e-05
        %v321 = vrsqrt.pop %v320
        %v322 = vmul.f32 %v321, %v320
        %v323 = vmul.f32 %v322, %v321
        %v324 = vmul.f32 0.5, %v323
        %v325 = vsub.f32 1.5, %v324
        %v326 = vmul.f32 %v321, %v325
        %vm327 = vweird.f32 %v320
        %vm328 = vweird.f32 %v321
        %vm329 = vmor %vm327, %vm328
        %v330 = vsel %vm329, %v321, %v326
        %vm331 = vcmp.ge.s32.totalorder %v228, 4
        %vm332 = vcmp.lt.s32.totalorder %v228, 8
        %vm333 = vmand %vm331, %vm332
        %v334 = vsel %vm333, %v299, %v281
        %v335 = vsel %vm333, %v330, %v282
        %v336 = vsub.f32 %v223, %v334
        %v337 = vsub.f32 %v224, %v334
        %v338 = vmul.f32 %v336, %v335
        %v339 = vmul.f32 %v337, %v335
        %341 = vset.pattern.permute.xlu0 0
        %342 = vperm.xlu0 %341, %v225
        %v343 = vpop.permute.xlu0 %342
        %v345 = vmul.f32 %v338, %v343
        %v346 = vmul.f32 %v339, %v343
        %348 = vset.pattern.permute.xlu0 0
        %349 = vperm.xlu0 %348, %v226
        %v350 = vpop.permute.xlu0 %349
        %v352 = vadd.f32 %v345, %v350
        %v353 = vadd.f32 %v346, %v350
        %v354 = vmul.f32 %v352, 0.5
        %v355 = vmul.f32 %v353, 0.5
        %v356 = vmul.f32 %v352, 0.044715
        %v357 = vmul.f32 %v353, 0.044715
        %v358 = vmul.f32 %v356, %v352
        %v359 = vmul.f32 %v357, %v353
        %v360 = vmul.f32 %v358, %v352
        %v361 = vmul.f32 %v359, %v353
        %v362 = vadd.f32 %v352, %v360
        %v363 = vadd.f32 %v353, %v361
        %v364 = vmul.f32 %v362, 0.7978846
        %v365 = vmul.f32 %v363, 0.7978846
        %v366 = vtanh.pop %v364
        %v367 = vtanh.pop %v365
        %v368 = vadd.f32 %v366, 1.0
        %v369 = vadd.f32 %v367, 1.0
        %v370 = vmul.f32 %v354, %v368
        %v371 = vmul.f32 %v355, %v369
        %v372 = vld [vmem:[%s3] sm:$0xff]
        %v373 = vld [vmem:[%s3 + $0x8] sm:$0xff]
        %v374 = vld [vmem:[%s3 + $0x10] sm:$0xff]
        %v375 = vld [vmem:[%s3 + $0x18] sm:$0xff]
        %v376 = vld [vmem:[%s4] sm:$0xff]
        %v377 = vld [vmem:[%s4 + $0x8] sm:$0xff]
        %v378 = vld [vmem:[%s4 + $0x10] sm:$0xff]
        %v379 = vld [vmem:[%s4 + $0x18] sm:$0xff]
        %381 = vset.pattern.permute.xlu0 0
        %382 = vperm.xlu0 %381, %v376
        %v383 = vpop.permute.xlu0 %382
        %386 = vset.pattern.permute.xlu0 0
        %387 = vperm.xlu0 %386, %v377
        %v388 = vpop.permute.xlu0 %387
        %391 = vset.pattern.permute.xlu0 0
        %392 = vperm.xlu0 %391, %v378
        %v393 = vpop.permute.xlu0 %392
        %396 = vset.pattern.permute.xlu0 0
        %397 = vperm.xlu0 %396, %v379
        %v398 = vpop.permute.xlu0 %397
        %vm400 = vcmask 64512
        %v402 = vsel %vm400, %v372, 0
        %v405 = vsel %vm400, %v373, 0
        %v408 = vsel %vm400, %v374, 0
        %v411 = vsel %vm400, %v375, 0
        %413 = vmatpush.msra.mxu0 0.0
        %414 = vmatpush.msra.mxu0 0.0
        %415 = vmatpush.msra.mxu0 0.0
        %416 = vmatpush.msra.mxu0 0.0
        %417 = vmatpush.msra.mxu0 0.0
        %418 = vmatpush.msra.mxu0 0.0
        %419 = vmatpush.msra.mxu0 0.0
        %420 = vmatpush.msra.mxu0 0.0
        %421 = vmatpush.msra.mxu0 0.0
        %422 = vmatpush.msra.mxu0 0.0
        %423 = vmatpush.msra.mxu0 0.0
        %424 = vmatpush.msra.mxu0 0.0
        %425 = vmatpush.msra.mxu0 0.0
        %426 = vmatpush.msra.mxu0 0.0
        %427 = vmatpush.msra.mxu0 0.0
        %428 = vmatpush.msra.mxu0 %v370
        %429 = vmatmul.f32.gmra.mxu0 %v402
        %v430 = vpop.f32.mrf.mxu0
        %v431 = vadd.f32 %v383, %v430
        %432 = vmatmul.f32.gmra.mxu0 %v405
        %v433 = vpop.f32.mrf.mxu0
        %v434 = vadd.f32 %v388, %v433
        %435 = vmatmul.f32.gmra.mxu0 %v408
        %v436 = vpop.f32.mrf.mxu0
        %v437 = vadd.f32 %v393, %v436
        %438 = vmatmul.f32.gmra.mxu0 %v411
        %v439 = vpop.f32.mrf.mxu0
        %v440 = vadd.f32 %v398, %v439
        %441 = vdwg.mxu0
        %442 = vmatpush.msra.mxu0 0.0
        %443 = vmatpush.msra.mxu0 0.0
        %444 = vmatpush.msra.mxu0 0.0
        %445 = vmatpush.msra.mxu0 0.0
        %446 = vmatpush.msra.mxu0 0.0
        %447 = vmatpush.msra.mxu0 0.0
        %448 = vmatpush.msra.mxu0 0.0
        %449 = vmatpush.msra.mxu0 0.0
        %450 = vmatpush.msra.mxu0 0.0
        %451 = vmatpush.msra.mxu0 0.0
        %452 = vmatpush.msra.mxu0 0.0
        %453 = vmatpush.msra.mxu0 0.0
        %454 = vmatpush.msra.mxu0 0.0
        %455 = vmatpush.msra.mxu0 0.0
        %456 = vmatpush.msra.mxu0 0.0
        %457 = vmatpush.msra.mxu0 %v371
        %458 = vmatmul.f32.gmra.mxu0 %v402
        %v459 = vpop.f32.mrf.mxu0
        %v460 = vadd.f32 %v383, %v459
        %461 = vmatmul.f32.gmra.mxu0 %v405
        %v462 = vpop.f32.mrf.mxu0
        %v463 = vadd.f32 %v388, %v462
        %464 = vmatmul.f32.gmra.mxu0 %v408
        %v465 = vpop.f32.mrf.mxu0
        %v466 = vadd.f32 %v393, %v465
        %467 = vmatmul.f32.gmra.mxu0 %v411
        %v468 = vpop.f32.mrf.mxu0
        %v469 = vadd.f32 %v398, %v468
        %470 = vdwg.mxu0
        %471 = vst [vmem:[%s217] sm:$0xff] %v431
        %472 = vst [vmem:[%s217 + $0x8] sm:$0xff] %v460
        %473 = vst [vmem:[%s217 + $0x10] sm:$0xff] %v434
        %474 = vst [vmem:[%s217 + $0x18] sm:$0xff] %v463
        %475 = vst [vmem:[%s217 + $0x20] sm:$0xff] %v437
        %476 = vst [vmem:[%s217 + $0x28] sm:$0xff] %v466
        %477 = vst [vmem:[%s217 + $0x30] sm:$0xff] %v440
        %478 = vst [vmem:[%s217 + $0x38] sm:$0xff] %v469
        %s479 = sand.u32 %s137, 1
        %s480 = scalar_lea.sflag [#allocation3], %s479
        %s481 = sand.u32 %s137, 1
        %s482 = smul.addr %s481, 64
        %s483 = scalar_lea.vmem [#allocation2], %s482
        // Predicated region
        $region41: #{tpu_custom_call.1} parent=39 // pred_check
          %p484 = pneg %p147
        $region42: #{tpu_custom_call.1} parent=39 // pred_check_branch
          %486 = sbr.rel (%p484) target = $region44
        $region43: #{tpu_custom_call.1} parent=39 // pred_region
          %488 = vsyncadd %s480, 0
          %s489 = smul.addr %s19, 8
          %s490 = smul.addr %s489, 8
          %s491 = scalar_lea.hbm %s5, %s490
          %s492 = sshll.u32 %s483, 4
          %s493 = int_to_ptr.vmem [resolvable:$true] %s492
          %s494 = sshll.u32 %s491, 4
          %s495 = int_to_ptr.hbm [resolvable:$true] %s494
          %500 = dma.vmem_to_hbm [thread:$0]  %s493, 1024, %s495, %s480, 256, 256, 16
        $region44: #{tpu_custom_call.1} parent=39 // pred_fallthru
          _
      $region40: #{tpu_custom_call.1} parent=5 // pred_fallthru
        _
      %p501 = scmp.le.s32.totalorder 2, %s14
      // Predicated region
      $region45: #{tpu_custom_call.1} parent=5 // pred_check
        %p502 = pneg %p501
      $region46: #{tpu_custom_call.1} parent=5 // pred_check_branch
        %504 = sbr.rel (%p502) target = $region48
      $region47: #{tpu_custom_call.1} parent=5 // pred_region
        %s505 = ssub.s32 %s14, 2
        // Predicated region
        $region49: #{tpu_custom_call.1} parent=47 // pred_check
          %p506 = pneg %p153
        $region50: #{tpu_custom_call.1} parent=47 // pred_check_branch
          %508 = sbr.rel (%p506) target = $region52
        $region51: #{tpu_custom_call.1} parent=47 // pred_region
          %s509 = sand.u32 %s138, 1
          %s510 = scalar_lea.sflag [#allocation3], %s509
          %s511 = sand.u32 %s138, 1
          %s512 = smul.addr %s511, 64
          %s513 = scalar_lea.vmem [#allocation2], %s512
          %515 = dma.done %s510, 1024
        $region52: #{tpu_custom_call.1} parent=47 // pred_fallthru
          _
      $region48: #{tpu_custom_call.1} parent=5 // pred_fallthru
        _
    $region6: #{tpu_custom_call.1} parent=1 // loop_footer
      %s18 = sadd.s32 1, %s14
    $region7: #{tpu_custom_call.1} parent=1 // loop_footer_branch
      %13 = sbr.rel target = $region3
    $region8: #{tpu_custom_call.1} parent=1 // loop_exit
      _
    %516 = vsyncpa [#allocation3], 1
    %s517 = scalar_lea.sflag [#allocation3], 1
    %518 = vsyncpa %s517, 1

</llo_original>
